<compile_context>
chip_gen: v7x
topology: tpu7x:2x2x1
jax: 0.10.0
libtpu: 0.0.40
codegen_flags: <defaults>
</compile_context>

<pallas_src>
import functools
import math

import jax
import jax.numpy as jnp
from jax import lax
from jax.experimental import pallas as pl
from jax.experimental.pallas import tpu as pltpu


# -----------------------------------------------------------------------------
# Kernel 1: fused LayerNorm + Linear over row tiles:  [R, C] -> [R, H]
# (antibody single path: a = LN(s) @ w_s + bias_s, emitted in bf16)
# -----------------------------------------------------------------------------
def _ln_linear_kernel(x_ref, g_ref, beta_ref, w_ref, b_ref, o_ref, *, ln_eps):
    x = x_ref[...].astype(jnp.float32)                       # [TR, C]
    mu = jnp.mean(x, axis=-1, keepdims=True)
    var = jnp.mean((x - mu) ** 2, axis=-1, keepdims=True)    # biased variance (torch LN)
    xn = (x - mu) * lax.rsqrt(var + ln_eps)
    y = xn * g_ref[...] + beta_ref[...]                      # gamma/beta: [1, C]
    out = jnp.dot(y, w_ref[...], preferred_element_type=jnp.float32) + b_ref[...]
    o_ref[...] = out.astype(o_ref.dtype)


def ln_linear(x2d, gamma, beta, w, b, *, ln_eps=1e-5, block_rows=512,
              out_dtype=jnp.bfloat16):
    R, C = x2d.shape
    H = w.shape[1]
    tr = R if R <= block_rows else block_rows                # block_rows % 8 == 0
    kernel = functools.partial(_ln_linear_kernel, ln_eps=ln_eps)
    return pl.pallas_call(
        kernel,
        out_shape=jax.ShapeDtypeStruct((R, H), out_dtype),
        grid=(pl.cdiv(R, tr),),
        in_specs=[
            pl.BlockSpec((tr, C), lambda r: (r, 0)),
            pl.BlockSpec((1, C), lambda r: (0, 0)),
            pl.BlockSpec((1, C), lambda r: (0, 0)),
            pl.BlockSpec((C, H), lambda r: (0, 0)),
            pl.BlockSpec((1, H), lambda r: (0, 0)),
        ],
        out_specs=pl.BlockSpec((tr, H), lambda r: (r, 0)),
        compiler_params=pltpu.CompilerParams(dimension_semantics=("parallel",)),
    )(x2d, gamma.reshape(1, C), beta.reshape(1, C), w, b.reshape(1, H))


# -----------------------------------------------------------------------------
# Kernel 2: antigen MSA path with the S-reduction fused.
#   acc[j, :]      = sum_s LN(m[n, s, j, :])                (streamed over S tiles)
#   Bsum[j, e]     = acc @ w_m + S * bias_m
#   U[j, c*cz + z] = sum_e Bsum[j, e] * WrG[e, c*cz + z]    (linear_out folded, /denom)
# b is never written to HBM; epilogue is two small fp32 MXU matmuls; the last
# (possibly partial) S tile is handled by row-masking instead of requiring ts|S.
# -----------------------------------------------------------------------------
def _msa_u_kernel(m_ref, g_ref, beta_ref, wm_ref, bm_ref, wrg_ref, o_ref, acc_ref,
                  *, ln_eps, s_total, ts, needs_mask):
    s_idx = pl.program_id(2)

    @pl.when(s_idx == 0)
    def _init():
        acc_ref[...] = jnp.zeros_like(acc_ref)

    x = m_ref[0].astype(jnp.float32)                         # [TS, TJ, c_m]
    mu = jnp.mean(x, axis=-1, keepdims=True)
    var = jnp.mean((x - mu) ** 2, axis=-1, keepdims=True)
    xn = (x - mu) * lax.rsqrt(var + ln_eps)
    y = xn * g_ref[...] + beta_ref[...]                      # [TS, TJ, c_m]
    if needs_mask:
        # mask padded MSA rows in the (partial) last S tile
        row = lax.broadcasted_iota(jnp.int32, (ts, y.shape[1], 1), 0)
        valid = row < (s_total - s_idx * ts)
        y = jnp.where(valid, y, 0.0)
    acc_ref[...] += jnp.sum(y, axis=0)                       # [TJ, c_m]

    @pl.when(s_idx == pl.num_programs(2) - 1)
    def _finalize():
        bsum = jnp.dot(acc_ref[...], wm_ref[...],
                       preferred_element_type=jnp.float32) + bm_ref[...]     # [TJ, ch]
        u = jnp.dot(bsum, wrg_ref[...], preferred_element_type=jnp.float32)  # [TJ, ch*cz]
        o_ref[0] = u.astype(o_ref.dtype)


def msa_project_sum(m, gamma, beta, w_m, bias_m_scaled, wrg, *, ln_eps=1e-5,
                    out_dtype=jnp.bfloat16, m_block_bytes=8 * 1024 * 1024):
    N, S, L2, c_m = m.shape
    ch = w_m.shape[1]
    chcz = wrg.shape[1]

    tj = L2 if L2 <= 256 else 256                            # 256 % 8 == 0
    # S tile: as deep as the ~8 MiB block budget allows; last tile may be partial
    # (masked in-kernel), so awkward S no longer collapses the tile size.
    ts_cap = max(1, m_block_bytes // (tj * c_m * 4))
    ts = min(S, ts_cap)
    needs_mask = (S % ts) != 0

    kernel = functools.partial(_msa_u_kernel, ln_eps=ln_eps, s_total=S, ts=ts,
                               needs_mask=needs_mask)
    return pl.pallas_call(
        kernel,
        out_shape=jax.ShapeDtypeStruct((N, L2, chcz), out_dtype),
        grid=(N, pl.cdiv(L2, tj), pl.cdiv(S, ts)),
        in_specs=[
            pl.BlockSpec((1, ts, tj, c_m), lambda n, j, si: (n, si, j, 0)),
            pl.BlockSpec((1, c_m), lambda n, j, si: (0, 0)),
            pl.BlockSpec((1, c_m), lambda n, j, si: (0, 0)),
            pl.BlockSpec((c_m, ch), lambda n, j, si: (0, 0)),
            pl.BlockSpec((1, ch), lambda n, j, si: (0, 0)),
            pl.BlockSpec((ch, chcz), lambda n, j, si: (0, 0)),
        ],
        out_specs=pl.BlockSpec((1, tj, chcz), lambda n, j, si: (n, j, 0)),
        scratch_shapes=[pltpu.VMEM((tj, c_m), jnp.float32)],
        compiler_params=pltpu.CompilerParams(
            dimension_semantics=("parallel", "parallel", "arbitrary"),
            # <= 48 MiB: safe on v7x (64 MiB/TC) while allowing deep S tiles on
            # v5e/v6e (128 MiB); worst-case working set here is ~22 MiB.
            vmem_limit_bytes=48 * 1024 * 1024),
    )(m, gamma.reshape(1, c_m), beta.reshape(1, c_m), w_m,
      bias_m_scaled.reshape(1, ch), wrg)


# -----------------------------------------------------------------------------
# Kernel 3 (hot path): ONE lane-dense bf16 MXU matmul per tile.
#   out[n, i, j*cz + z] = a[n, i, :] @ U2[n, :, j*cz + z] + bias_out[z]/denom
# Grid is (n, jc, i) with i innermost so the (ch, tjc) u2 tile stays resident
# in VMEM across all i steps (no re-DMA). Output is emitted in bf16.
# -----------------------------------------------------------------------------
def _opm_matmul_kernel(a_ref, u_ref, bias_ref, o_ref):
    acc = jnp.dot(a_ref[0], u_ref[0], preferred_element_type=jnp.float32)  # [TI, TJC]
    o_ref[0] = (acc + bias_ref[...]).astype(o_ref.dtype)


def _select_tjc(l2cz, cz, col_cap):
    """Column tile: multiple of cz (bias repeat) and of 128 (lane-dense stores)."""
    if l2cz <= col_cap:
        return l2cz                                          # full width (single tile)
    step = 128 // math.gcd(cz, 128)                          # tj % step == 0 -> tj*cz % 128 == 0
    tj = max(step, (col_cap // cz) // step * step)
    return tj * cz


def opm_matmul(a, u2, bias_scaled, cz, *, out_dtype=jnp.bfloat16,
               row_cap=512, col_cap=4096):
    N, L1, ch = a.shape
    _, _, l2cz = u2.shape

    ti = L1 if L1 <= row_cap else row_cap                    # 512 % 8 == 0
    tjc = _select_tjc(l2cz, cz, col_cap)
    # NOTE(v7x): if N == 1 and l2cz <= col_cap the parallel axes have one block
    # each; shrinking tjc to create >= 2 jc blocks would engage the second TC.

    bias_tile = jnp.tile(bias_scaled.astype(jnp.float32), tjc // cz).reshape(1, tjc)

    flops = int(2 * N * L1 * ch * l2cz)
    bytes_accessed = int(2 * (N * L1 * ch + N * ch * l2cz + N * L1 * l2cz))

    return pl.pallas_call(
        _opm_matmul_kernel,
        out_shape=jax.ShapeDtypeStruct((N, L1, l2cz), out_dtype),
        grid=(N, pl.cdiv(l2cz, tjc), pl.cdiv(L1, ti)),       # i innermost -> u2 resident
        in_specs=[
            pl.BlockSpec((1, ti, ch), lambda n, jc, i: (n, i, 0)),
            pl.BlockSpec((1, ch, tjc), lambda n, jc, i: (n, 0, jc)),
            pl.BlockSpec((1, tjc), lambda n, jc, i: (0, 0)),
        ],
        out_specs=pl.BlockSpec((1, ti, tjc), lambda n, jc, i: (n, i, jc)),
        compiler_params=pltpu.CompilerParams(
            dimension_semantics=("parallel", "parallel", "parallel"),
            vmem_limit_bytes=48 * 1024 * 1024),
        cost_estimate=pl.CostEstimate(flops=flops, transcendentals=0,
                                      bytes_accessed=bytes_accessed),
    )(a, u2, bias_tile)


# -----------------------------------------------------------------------------
# Full forward pass
# -----------------------------------------------------------------------------
def outer_product_mean_sm(s, m, params, *, eps=1e-3, ln_eps=1e-5,
                          out_dtype=jnp.bfloat16):
    N, L1, c_s = s.shape
    _, S, L2, c_m = m.shape
    ch = params["w_s"].shape[1]
    cz = params["w_out"].shape[1]
    denom = float(S) + 2.0 * eps   # norm (== num_seqs under all-ones masks) + 2*eps

    # a-path: a = LN(s) @ w_s + bias_s   (bf16 operand for the hot matmul)
    a = ln_linear(s.reshape(N * L1, c_s), params["g_s"], params["b_s"],
                  params["w_s"], params["bias_s"], ln_eps=ln_eps,
                  out_dtype=jnp.bfloat16).reshape(N, L1, ch)

    # linear_out weight: [ch*ch, cz], flattened index = c*ch + e.
    # WrG[e, c*cz + z] = Wr[c, e, z] / denom   (1/denom folded into the weight)
    wrg = (params["w_out"].reshape(ch, ch, cz).transpose(1, 0, 2)
           .reshape(ch, ch * cz) / denom).astype(jnp.float32)

    # m-path (fused S-reduction + linear_m + folded linear_out), bf16 output:
    # U_alt[n, j, c*cz + z] = sum_e Bsum[n, j, e] * WrG[e, c*cz + z]
    u_alt = msa_project_sum(m, params["g_m"], params["b_m"], params["w_m"],
                            params["bias_m"] * float(S), wrg, ln_eps=ln_eps,
                            out_dtype=jnp.bfloat16)

    # Layout plumbing only (small bf16 tensor): U2[n, c, j*cz + z] = U_alt[n, j, c*cz + z]
    u2 = (u_alt.reshape(N, L2, ch, cz).transpose(0, 2, 1, 3)
          .reshape(N, ch, L2 * cz))

    # Hot path: one MXU matmul per tile, lane-dense bf16 [N, L1, L2*cz] output.
    out_flat = opm_matmul(a, u2, params["bias_out"] / denom, cz,
                          out_dtype=out_dtype)
    return out_flat.reshape(N, L1, L2, cz)


# -----------------------------------------------------------------------------
# Pure-JAX fp32 reference (for correctness check)
# -----------------------------------------------------------------------------
def reference(s, m, params, *, eps=1e-3, ln_eps=1e-5):
    def ln(x, g, b):
        mu = x.mean(-1, keepdims=True)
        var = ((x - mu) ** 2).mean(-1, keepdims=True)
        return (x - mu) / jnp.sqrt(var + ln_eps) * g + b

    a = ln(s, params["g_s"], params["b_s"]) @ params["w_s"] + params["bias_s"]   # [N,L1,ch]
    b = ln(m, params["g_m"], params["b_m"]) @ params["w_m"] + params["bias_m"]   # [N,S,L2,ch]
    S = m.shape[1]
    c_hidden = a.shape[-1]
    outer = jnp.einsum("nic,nsje->nijce", a, b)                                  # [N,L1,L2,ch,ch]
    outer = outer.reshape(outer.shape[:-2] + (c_hidden * c_hidden,))
    outer = outer @ params["w_out"] + params["bias_out"]
    return outer / (float(S) + 2.0 * eps)


if __name__ == "__main__":
    N, L1, S, L2 = 2, 8, 4, 8
    c_s, c_m, c_z, c_hidden = 16, 24, 16, 32

    key = jax.random.PRNGKey(0)
    ks = jax.random.split(key, 12)
    params = {
        "g_s": 1.0 + 0.1 * jax.random.normal(ks[0], (c_s,), jnp.float32),
        "b_s": 0.1 * jax.random.normal(ks[1], (c_s,), jnp.float32),
        "w_s": 0.1 * jax.random.normal(ks[2], (c_s, c_hidden), jnp.float32),
        "bias_s": 0.05 * jax.random.normal(ks[3], (c_hidden,), jnp.float32),
        "g_m": 1.0 + 0.1 * jax.random.normal(ks[4], (c_m,), jnp.float32),
        "b_m": 0.1 * jax.random.normal(ks[5], (c_m,), jnp.float32),
        "w_m": 0.1 * jax.random.normal(ks[6], (c_m, c_hidden), jnp.float32),
        "bias_m": 0.05 * jax.random.normal(ks[7], (c_hidden,), jnp.float32),
        "w_out": 0.05 * jax.random.normal(ks[8], (c_hidden * c_hidden, c_z), jnp.float32),
        "bias_out": 0.05 * jax.random.normal(ks[9], (c_z,), jnp.float32),
    }

    s = jax.random.normal(ks[10], (N, L1, c_s), jnp.float32)
    m = jax.random.normal(ks[11], (N, S, L2, c_m), jnp.float32)

    out = jax.block_until_ready(outer_product_mean_sm(s, m, params))
    ref = jax.block_until_ready(reference(s, m, params))

    assert out.shape == (N, L1, L2, c_z), out.shape
    # bf16 hot path -> compare with a tolerance relative to the output scale.
    out32 = out.astype(jnp.float32)
    max_err = float(jnp.max(jnp.abs(out32 - ref)))
    scale = float(jnp.max(jnp.abs(ref)))
    assert max_err <= 3e-2 * scale + 3e-3, (
        f"mismatch vs reference: max abs err = {max_err}, scale = {scale}")

    print("KERNEL_OK")
</pallas_src>

<mosaic_0001>
module attributes {stable_mosaic.version = 11 : i64} {
  func.func @_ln_linear_kernel(%arg0: i32, %arg1: memref<16x16xf32, #tpu.memory_space<vmem>>, %arg2: memref<1x16xf32, #tpu.memory_space<vmem>>, %arg3: memref<1x16xf32, #tpu.memory_space<vmem>>, %arg4: memref<16x32xf32, #tpu.memory_space<vmem>>, %arg5: memref<1x32xf32, #tpu.memory_space<vmem>>, %arg6: memref<16x32xbf16, #tpu.memory_space<vmem>>) attributes {dimension_semantics = [#tpu.dimension_semantics<parallel>], iteration_bounds = array<i64: 1>, scalar_prefetch = 0 : i64, scratch_operands = 0 : i64, tpu.core_type = #tpu.core_type<tc>, window_params = [{transform_indices = @transform_0, window_bounds = array<i64: 16, 16>}, {pipeline_mode = #tpu.pipeline_mode<synchronous>, transform_indices = @transform_1, window_bounds = array<i64: 1, 16>}, {pipeline_mode = #tpu.pipeline_mode<synchronous>, transform_indices = @transform_2, window_bounds = array<i64: 1, 16>}, {pipeline_mode = #tpu.pipeline_mode<synchronous>, transform_indices = @transform_3, window_bounds = array<i64: 16, 32>}, {pipeline_mode = #tpu.pipeline_mode<synchronous>, transform_indices = @transform_4, window_bounds = array<i64: 1, 32>}, {transform_indices = @transform_5, window_bounds = array<i64: 16, 32>}]} {
    %c0 = arith.constant 0 : index
    %c0_0 = arith.constant 0 : index
    %0 = vector.load %arg1[%c0, %c0_0] : memref<16x16xf32, #tpu.memory_space<vmem>>, vector<16x16xf32>
    %cst = arith.constant dense<0.000000e+00> : vector<16xf32>
    %1 = vector.multi_reduction <add>, %0, %cst [1] : vector<16x16xf32> to vector<16xf32>
    %2 = vector.shape_cast %1 : vector<16xf32> to vector<16x1xf32>
    %cst_1 = arith.constant 1.600000e+01 : f32
    %3 = vector.broadcast %cst_1 : f32 to vector<16x1xf32>
    %4 = arith.divf %2, %3 : vector<16x1xf32>
    %5 = vector.broadcast %4 : vector<16x1xf32> to vector<16x16xf32>
    %6 = arith.subf %0, %5 : vector<16x16xf32>
    %7 = arith.mulf %6, %6 : vector<16x16xf32>
    %cst_2 = arith.constant dense<0.000000e+00> : vector<16xf32>
    %8 = vector.multi_reduction <add>, %7, %cst_2 [1] : vector<16x16xf32> to vector<16xf32>
    %9 = vector.shape_cast %8 : vector<16xf32> to vector<16x1xf32>
    %cst_3 = arith.constant 1.600000e+01 : f32
    %10 = vector.broadcast %cst_3 : f32 to vector<16x1xf32>
    %11 = arith.divf %9, %10 : vector<16x1xf32>
    %12 = vector.broadcast %4 : vector<16x1xf32> to vector<16x16xf32>
    %13 = arith.subf %0, %12 : vector<16x16xf32>
    %cst_4 = arith.constant 9.99999974E-6 : f32
    %14 = vector.broadcast %cst_4 : f32 to vector<16x1xf32>
    %15 = arith.addf %11, %14 : vector<16x1xf32>
    %16 = math.rsqrt %15 : vector<16x1xf32>
    %17 = vector.broadcast %16 : vector<16x1xf32> to vector<16x16xf32>
    %18 = arith.mulf %13, %17 : vector<16x16xf32>
    %c0_5 = arith.constant 0 : index
    %c0_6 = arith.constant 0 : index
    %19 = vector.load %arg2[%c0_5, %c0_6] : memref<1x16xf32, #tpu.memory_space<vmem>>, vector<1x16xf32>
    %20 = vector.broadcast %19 : vector<1x16xf32> to vector<16x16xf32>
    %21 = arith.mulf %18, %20 : vector<16x16xf32>
    %c0_7 = arith.constant 0 : index
    %c0_8 = arith.constant 0 : index
    %22 = vector.load %arg3[%c0_7, %c0_8] : memref<1x16xf32, #tpu.memory_space<vmem>>, vector<1x16xf32>
    %23 = vector.broadcast %22 : vector<1x16xf32> to vector<16x16xf32>
    %24 = arith.addf %21, %23 : vector<16x16xf32>
    %c0_9 = arith.constant 0 : index
    %c0_10 = arith.constant 0 : index
    %25 = vector.load %arg4[%c0_9, %c0_10] : memref<16x32xf32, #tpu.memory_space<vmem>>, vector<16x32xf32>
    %cst_11 = arith.constant dense<0.000000e+00> : vector<16x32xf32>
    %26 = tpu.matmul %24, %25, %cst_11 {dimension_numbers = #tpu.dot_dimension_numbers<[1], [0], [0], [1], [0, 0, 1, 1], [], []>} : vector<16x16xf32>, vector<16x32xf32>, vector<16x32xf32> -> vector<16x32xf32>
    %c0_12 = arith.constant 0 : index
    %c0_13 = arith.constant 0 : index
    %27 = vector.load %arg5[%c0_12, %c0_13] : memref<1x32xf32, #tpu.memory_space<vmem>>, vector<1x32xf32>
    %28 = vector.broadcast %27 : vector<1x32xf32> to vector<16x32xf32>
    %29 = arith.addf %26, %28 : vector<16x32xf32>
    %30 = arith.truncf %29 : vector<16x32xf32> to vector<16x32xbf16>
    %c0_14 = arith.constant 0 : index
    %c0_15 = arith.constant 0 : index
    %31 = vector.load %arg6[%c0_14, %c0_15] : memref<16x32xbf16, #tpu.memory_space<vmem>>, vector<16x32xbf16>
    tpu.vector_store %arg6[%c0_14, %c0_15], %30 {strides = array<i32>} : memref<16x32xbf16, #tpu.memory_space<vmem>>, vector<16x32xbf16>,
    return
  }
  func.func @transform_0(%arg0: i32) -> (i32, i32) {
    %c0_i32 = arith.constant 0 : i32
    %c0_i32_0 = arith.constant 0 : i32
    return %arg0, %c0_i32 : i32, i32
  }
  func.func @transform_1(%arg0: i32) -> (i32, i32) {
    %c0_i32 = arith.constant 0 : i32
    %c0_i32_0 = arith.constant 0 : i32
    %c0_i32_1 = arith.constant 0 : i32
    return %c0_i32, %c0_i32_0 : i32, i32
  }
  func.func @transform_2(%arg0: i32) -> (i32, i32) {
    %c0_i32 = arith.constant 0 : i32
    %c0_i32_0 = arith.constant 0 : i32
    %c0_i32_1 = arith.constant 0 : i32
    return %c0_i32, %c0_i32_0 : i32, i32
  }
  func.func @transform_3(%arg0: i32) -> (i32, i32) {
    %c0_i32 = arith.constant 0 : i32
    %c0_i32_0 = arith.constant 0 : i32
    %c0_i32_1 = arith.constant 0 : i32
    return %c0_i32, %c0_i32_0 : i32, i32
  }
  func.func @transform_4(%arg0: i32) -> (i32, i32) {
    %c0_i32 = arith.constant 0 : i32
    %c0_i32_0 = arith.constant 0 : i32
    %c0_i32_1 = arith.constant 0 : i32
    return %c0_i32, %c0_i32_0 : i32, i32
  }
  func.func @transform_5(%arg0: i32) -> (i32, i32) {
    %c0_i32 = arith.constant 0 : i32
    %c0_i32_0 = arith.constant 0 : i32
    return %arg0, %c0_i32 : i32, i32
  }
}

</mosaic_0001>

<llo_original>
// kernel: tpu_custom_call.1
$region0: #{tpu_custom_call.1}
  #allocation0 [shape = 'u32[]', space=smem, size = 0x4, offset = 0x4, fixed_abs, tag = 'smem constant byte address 0x4 - core index']
  #allocation1 [shape = 'u32[144,128]{1,0:T(1,128)}', space=vmem, size = 0x12000, scoped, tag = 'internal scratch']
  %s0 = inlined_call_operand.hbm [shape: f32[16,16], index: 0, kind: input, shape index: {}]
  %s1 = inlined_call_operand.vmem [shape: f32[1,16], index: 1, kind: input, shape index: {}]
  %s2 = inlined_call_operand.vmem [shape: f32[1,16], index: 2, kind: input, shape index: {}]
  %s3 = inlined_call_operand.hbm [shape: f32[16,32], index: 3, kind: input, shape index: {}]
  %s4 = inlined_call_operand.vmem [shape: f32[1,32], index: 4, kind: input, shape index: {}]
  %s5 = inlined_call_operand.hbm [shape: bf16[16,32], index: 5, kind: output, shape index: {}]
  %s6 = sld [smem:[#allocation0]]
  $region38: #{tpu_custom_call.1} parent=0
    _
  %s8 = ssub.s32 1, %s6
  %s9 = scalar_select 0, %s8, %s6
  $region1: #{tpu_custom_call.1} parent=0
    #allocation2 [shape = 'u8[8192]{0}', space=vmem, size = 0x2000, scoped, tag = 'input window, operand 0, single buffered']
    #allocation3 [shape = 's32[1]{0}', space=sflag, size = 0x4, scoped, tag = 'scoped memory for tpu_custom_call.1']
    #allocation4 [shape = 's32[1]{0}', space=sflag, size = 0x4, scoped, tag = 'scoped memory for tpu_custom_call.1']
    #allocation5 [shape = 'u8[8192]{0}', space=vmem, size = 0x2000, scoped, tag = 'input window, operand 3, single buffered']
    #allocation6 [shape = 's32[1]{0}', space=sflag, size = 0x4, scoped, tag = 'scoped memory for tpu_custom_call.1']
    #allocation7 [shape = 'u8[4096]{0}', space=vmem, size = 0x1000, scoped, tag = 'output window, operand 0, single buffered']
    %10 = vsyncpa [#allocation3], 0
    %11 = vsyncpa [#allocation6], 0
    %12 = vsyncpa [#allocation4], 0
    // Predicated region
    $region2: #{tpu_custom_call.1} parent=1 // pred_check
      _
    $region3: #{tpu_custom_call.1} parent=1 // pred_check_branch
      %14 = sbr.rel (0) target = $region5
    $region4: #{tpu_custom_call.1} parent=1 // pred_region
      %s16 = ssub.s32 256, 256
      %17 = vsyncadd [#allocation3], %s16
      %s18 = sshll.u32 [#allocation2], 4
      %s19 = int_to_ptr.vmem [resolvable:$true] %s18
      %24 = dma.hbm_to_vmem [thread:$0]  %s0, 256, %s19, [#allocation3], 128, 128, 8
    $region5: #{tpu_custom_call.1} parent=1 // pred_fallthru
      _
    // Predicated region
    $region6: #{tpu_custom_call.1} parent=1 // pred_check
      _
    $region7: #{tpu_custom_call.1} parent=1 // pred_check_branch
      %26 = sbr.rel (0) target = $region9
    $region8: #{tpu_custom_call.1} parent=1 // pred_region
      _
    $region9: #{tpu_custom_call.1} parent=1 // pred_fallthru
      _
    // Predicated region
    $region10: #{tpu_custom_call.1} parent=1 // pred_check
      _
    $region11: #{tpu_custom_call.1} parent=1 // pred_check_branch
      %28 = sbr.rel (0) target = $region13
    $region12: #{tpu_custom_call.1} parent=1 // pred_region
      _
    $region13: #{tpu_custom_call.1} parent=1 // pred_fallthru
      _
    // Predicated region
    $region14: #{tpu_custom_call.1} parent=1 // pred_check
      _
    $region15: #{tpu_custom_call.1} parent=1 // pred_check_branch
      %30 = sbr.rel (0) target = $region17
    $region16: #{tpu_custom_call.1} parent=1 // pred_region
      %s32 = ssub.s32 256, 256
      %33 = vsyncadd [#allocation6], %s32
      %s34 = sshll.u32 [#allocation5], 4
      %s35 = int_to_ptr.vmem [resolvable:$true] %s34
      %40 = dma.hbm_to_vmem [thread:$0]  %s3, 256, %s35, [#allocation6], 128, 128, 8
    $region17: #{tpu_custom_call.1} parent=1 // pred_fallthru
      _
    // Predicated region
    $region18: #{tpu_custom_call.1} parent=1 // pred_check
      _
    $region19: #{tpu_custom_call.1} parent=1 // pred_check_branch
      %42 = sbr.rel (0) target = $region21
    $region20: #{tpu_custom_call.1} parent=1 // pred_region
      _
    $region21: #{tpu_custom_call.1} parent=1 // pred_fallthru
      _
    // Predicated region
    $region22: #{tpu_custom_call.1} parent=1 // pred_check
      _
    $region23: #{tpu_custom_call.1} parent=1 // pred_check_branch
      %44 = sbr.rel (0) target = $region25
    $region24: #{tpu_custom_call.1} parent=1 // pred_region
      %45 = dma.done [#allocation3], 256
    $region25: #{tpu_custom_call.1} parent=1 // pred_fallthru
      _
    // Predicated region
    $region26: #{tpu_custom_call.1} parent=1 // pred_check
      _
    $region27: #{tpu_custom_call.1} parent=1 // pred_check_branch
      %47 = sbr.rel (0) target = $region29
    $region28: #{tpu_custom_call.1} parent=1 // pred_region
      %48 = dma.done [#allocation6], 256
    $region29: #{tpu_custom_call.1} parent=1 // pred_fallthru
      _
    %v49 = vld [vmem:[#allocation2] sm:$0xff]
    %v50 = vld [vmem:[#allocation2 + $0x8] sm:$0xff]
    %vm51 = vcmask 130048
    %v52 = vsel %vm51, %v49, 0.0
    %53 = vadd.xlane.f32.xlu0 %v52
    %v54 = vpop.xlane.xlu0 %53
    %v55 = vsel %vm51, %v50, 0.0
    %56 = vadd.xlane.f32.xlu0 %v55
    %v57 = vpop.xlane.xlu0 %56
    %v58 = vrcp.pop 16.0
    %v59 = vmul.f32 %v54, %v58
    %v60 = vmul.f32 %v57, %v58
    %v61 = vsub.f32 %v49, %v59
    %v62 = vsub.f32 %v50, %v60
    %v63 = vmul.f32 %v61, %v61
    %v64 = vmul.f32 %v62, %v62
    %v65 = vsel %vm51, %v63, 0.0
    %66 = vadd.xlane.f32.xlu0 %v65
    %v67 = vpop.xlane.xlu0 %66
    %v68 = vsel %vm51, %v64, 0.0
    %69 = vadd.xlane.f32.xlu0 %v68
    %v70 = vpop.xlane.xlu0 %69
    %v71 = vmul.f32 %v67, %v58
    %v72 = vmul.f32 %v70, %v58
    %v73 = vadd.f32 %v71, 1e-05
    %v74 = vadd.f32 %v72, 1e-05
    %v75 = vrsqrt.pop %v73
    %v76 = vrsqrt.pop %v74
    %v77 = vmul.f32 %v61, %v75
    %v78 = vmul.f32 %v62, %v76
    %v79 = vld [vmem:[%s1] sm:$0x1]
    %v81 = vlaneseq
    %v82 = vshrl.u32 %v81, 7
    %v83 = vsub.s32 0, %v82
    %v84 = vrot.slane %v79, %v83
    %v86 = vmul.f32 %v77, %v84
    %v87 = vmul.f32 %v78, %v84
    %v88 = vld [vmem:[%s2] sm:$0x1]
    %v90 = vlaneseq
    %v91 = vshrl.u32 %v90, 7
    %v92 = vsub.s32 0, %v91
    %v93 = vrot.slane %v88, %v92
    %v95 = vadd.f32 %v86, %v93
    %v96 = vadd.f32 %v87, %v93
    %v97 = vld [vmem:[#allocation5] sm:$0xff]
    %v98 = vld [vmem:[#allocation5 + $0x8] sm:$0xff]
    %v99 = vld [vmem:[%s4] sm:$0x1]
    %v101 = vlaneseq
    %v102 = vshrl.u32 %v101, 7
    %v103 = vsub.s32 0, %v102
    %v104 = vrot.slane %v99, %v103
    %v107 = vsel %vm51, %v95, 0
    %v110 = vsel %vm51, %v96, 0
    %112 = vmatprep.subr.mxu0 0.0
    %113 = vmatpush1.msra.mxu0 %v97
    %114 = vmatprep.subr.mxu0 0.0
    %115 = vmatpush1.msra.mxu0 %v98
    %116 = vmatprep.subr.mxu0 0.0
    %117 = vmatpush1.msra.mxu0 0.0
    %118 = vmatprep.subr.mxu0 0.0
    %119 = vmatpush1.msra.mxu0 0.0
    %120 = vmatprep.subr.mxu0 0.0
    %121 = vmatpush1.msra.mxu0 0.0
    %122 = vmatprep.subr.mxu0 0.0
    %123 = vmatpush1.msra.mxu0 0.0
    %124 = vmatprep.subr.mxu0 0.0
    %125 = vmatpush1.msra.mxu0 0.0
    %126 = vmatprep.subr.mxu0 0.0
    %127 = vmatpush1.msra.mxu0 0.0
    %128 = vmatprep.subr.mxu0 0.0
    %129 = vmatpush1.msra.mxu0 0.0
    %130 = vmatprep.subr.mxu0 0.0
    %131 = vmatpush1.msra.mxu0 0.0
    %132 = vmatprep.subr.mxu0 0.0
    %133 = vmatpush1.msra.mxu0 0.0
    %134 = vmatprep.subr.mxu0 0.0
    %135 = vmatpush1.msra.mxu0 0.0
    %136 = vmatprep.subr.mxu0 0.0
    %137 = vmatpush1.msra.mxu0 0.0
    %138 = vmatprep.subr.mxu0 0.0
    %139 = vmatpush1.msra.mxu0 0.0
    %140 = vmatprep.subr.mxu0 0.0
    %141 = vmatpush1.msra.mxu0 0.0
    %142 = vmatprep.subr.mxu0 0.0
    %143 = vmatpush1.msra.mxu0 0.0
    %144 = vmatprep.subr.mxu0 0.0
    %145 = vmatpush1.msra.mxu0 0.0
    %146 = vmatprep.subr.mxu0 0.0
    %147 = vmatpush1.msra.mxu0 0.0
    %148 = vmatprep.subr.mxu0 0.0
    %149 = vmatpush1.msra.mxu0 0.0
    %150 = vmatprep.subr.mxu0 0.0
    %151 = vmatpush1.msra.mxu0 0.0
    %152 = vmatprep.subr.mxu0 0.0
    %153 = vmatpush1.msra.mxu0 0.0
    %154 = vmatprep.subr.mxu0 0.0
    %155 = vmatpush1.msra.mxu0 0.0
    %156 = vmatprep.subr.mxu0 0.0
    %157 = vmatpush1.msra.mxu0 0.0
    %158 = vmatprep.subr.mxu0 0.0
    %159 = vmatpush1.msra.mxu0 0.0
    %160 = vmatprep.subr.mxu0 0.0
    %161 = vmatpush1.msra.mxu0 0.0
    %162 = vmatprep.subr.mxu0 0.0
    %163 = vmatpush1.msra.mxu0 0.0
    %164 = vmatprep.subr.mxu0 0.0
    %165 = vmatpush1.msra.mxu0 0.0
    %166 = vmatprep.subr.mxu0 0.0
    %167 = vmatpush1.msra.mxu0 0.0
    %168 = vmatprep.subr.mxu0 0.0
    %169 = vmatpush1.msra.mxu0 0.0
    %170 = vmatprep.subr.mxu0 0.0
    %171 = vmatpush1.msra.mxu0 0.0
    %172 = vmatprep.subr.mxu0 0.0
    %173 = vmatpush1.msra.mxu0 0.0
    %174 = vmatprep.subr.mxu0 0.0
    %175 = vmatpush1.msra.mxu0 0.0
    %176 = vmatprep.mubr.f32.mxu0 0.0
    %177 = vmatmul.mubr.f32.gmra.mrb[0].mxu0 %v107
    %v178 = vpop.f32.mrb[0].mxu0
    %v179 = vadd.f32 %v104, %v178
    %v180 = vpop.f32.mrb[0].mxu0
    %181 = vmatprep.mubr.f32.mxu0 0.0
    %182 = vmatmul.mubr.f32.gmra.mrb[0].mxu0 %v110
    %v183 = vpop.f32.mrb[0].mxu0
    %v184 = vadd.f32 %v104, %v183
    %v185 = vpop.f32.mrb[0].mxu0
    %186 = vdwg.mxu0
    %v187 = vpack.c.bf16 %v184, %v179
    %v189 = vunpack.c.l.b16 %v187
    %v190 = vunpack.c.h.b16 %v187
    %v191 = vpack.c.b16 %v189, %v189
    %v192 = vpack.c.b16 %v190, %v190
    %vm195 = vcmask 257024
    %196 = vst.msk [vmem:[#allocation7] sm:$0xf] %vm195, %v191
    %197 = vst.msk [vmem:[#allocation7 + $0x4] sm:$0xf] %vm195, %v192
    // Predicated region
    $region30: #{tpu_custom_call.1} parent=1 // pred_check
      _
    $region31: #{tpu_custom_call.1} parent=1 // pred_check_branch
      %199 = sbr.rel (0) target = $region33
    $region32: #{tpu_custom_call.1} parent=1 // pred_region
      %s201 = ssub.s32 128, 128
      %202 = vsyncadd [#allocation4], %s201
      %s203 = sshll.u32 [#allocation7], 4
      %s204 = int_to_ptr.vmem [resolvable:$true] %s203
      %209 = dma.vmem_to_hbm [thread:$0]  %s204, 128, %s5, [#allocation4], 64, 64, 4
    $region33: #{tpu_custom_call.1} parent=1 // pred_fallthru
      _
    // Predicated region
    $region34: #{tpu_custom_call.1} parent=1 // pred_check
      _
    $region35: #{tpu_custom_call.1} parent=1 // pred_check_branch
      %211 = sbr.rel (0) target = $region37
    $region36: #{tpu_custom_call.1} parent=1 // pred_region
      %212 = dma.done [#allocation4], 128
    $region37: #{tpu_custom_call.1} parent=1 // pred_fallthru
      _
    %213 = vsyncpa [#allocation3], 1
    %214 = vsyncpa [#allocation6], 1
    %215 = vsyncpa [#allocation4], 1

</llo_original>
